<compile_context>
chip_gen: v5e
topology: v5e:2x2
jax: 0.10.0
libtpu: 0.0.40
codegen_flags: <defaults>
</compile_context>

<pallas_src>
import functools

import jax
import jax.numpy as jnp
from jax.experimental import pallas as pl
from jax.experimental.pallas import tpu as pltpu

EPS = 1e-5  # PyTorch nn.LayerNorm default


# --------------------------------- helpers ------------------------------------- #
def _round_up(v, m):
    return ((v + m - 1) // m) * m


def _pick_block_rows(n, requested):
    """Row tile: multiple of 8, <= requested, and (when possible) small enough
    that the row grid has >= 2 steps so both v7x TensorCores get work."""
    requested = max(8, (requested // 8) * 8)
    full = _round_up(n, 8)
    two_step = _round_up(pl.cdiv(n, 2), 8)  # largest tile still giving >=2 steps
    return max(8, min(requested, full, two_step if n > 8 else full))


def _pick_block_k(d_in, target=512):
    """Largest multiple-of-128 divisor of d_in that is <= target (None if none)."""
    best = None
    k = 128
    while k <= min(d_in, target):
        if d_in % k == 0:
            best = k
        k += 128
    return best


def _vmem_limit_bytes(nbytes):
    """Explicit scoped-VMEM budget: actual need + headroom, floored/capped."""
    return int(max(16 * 2**20, min(int(1.5 * nbytes) + (1 << 20), 100 * 2**20)))


def _const_operand_spec(block_shape, index_map, nbytes):
    """BlockSpec for an operand whose index_map is constant across the grid.

    Double-buffering a constant-index operand wastes VMEM (2x residency of W'
    — most painful on v7x's 64 MiB VMEM), so request a single buffer when the
    operand is big enough to matter.  Falls back to the default spec if this
    Pallas build has no pipeline_mode / Buffered support.
    """
    if nbytes >= (2 << 20) and hasattr(pl, "Buffered"):
        try:
            return pl.BlockSpec(block_shape, index_map, pipeline_mode=pl.Buffered(1))
        except TypeError:
            pass
    return pl.BlockSpec(block_shape, index_map)


# ------------------- fused PreNorm(Linear), resident-W path -------------------- #
def _prenorm_linear_kernel(x_ref, w_ref, b_ref, o_ref, *, compute_dtype):
    # LayerNorm statistics in f32 (gamma/beta already folded into W'/b').
    x = x_ref[...].astype(jnp.float32)                      # (rows, D_in)
    mean = jnp.mean(x, axis=-1, keepdims=True)
    centered = x - mean
    var = jnp.mean(centered * centered, axis=-1, keepdims=True)
    y = (centered * jax.lax.rsqrt(var + EPS)).astype(compute_dtype)
    # MXU matmul: W' is pre-cast to compute_dtype in the wrapper; f32 accumulate.
    acc = jnp.dot(y, w_ref[...], preferred_element_type=jnp.float32)
    o_ref[...] = (acc + b_ref[...]).astype(o_ref.dtype)


def _pre_norm_linear_resident(x2d, w_c, b2d, *, br, compute_dtype, out_dtype):
    n, d_in = x2d.shape
    d_out = w_c.shape[1]
    grid = (pl.cdiv(n, br),)

    w_nbytes = d_in * d_out * jnp.dtype(w_c.dtype).itemsize
    vmem_need = (2 * br * d_in * x2d.dtype.itemsize          # x tile  (2 bufs)
                 + 2 * br * d_out * jnp.dtype(out_dtype).itemsize  # out tile (2 bufs)
                 + 2 * w_nbytes                              # resident W' (worst case)
                 + 2 * 8 * d_out * 4)                        # bias

    kernel = functools.partial(_prenorm_linear_kernel, compute_dtype=compute_dtype)
    return pl.pallas_call(
        kernel,
        out_shape=jax.ShapeDtypeStruct((n, d_out), out_dtype),
        grid_spec=pltpu.PrefetchScalarGridSpec(
            num_scalar_prefetch=0,
            grid=grid,
            in_specs=[
                pl.BlockSpec((br, d_in), lambda i: (i, 0)),                      # x tile
                _const_operand_spec((d_in, d_out), lambda i: (0, 0), w_nbytes),  # W' (resident)
                _const_operand_spec((1, d_out), lambda i: (0, 0), 4 * d_out),    # b' (f32)
            ],
            out_specs=pl.BlockSpec((br, d_out), lambda i: (i, 0)),
        ),
        compiler_params=pltpu.CompilerParams(
            dimension_semantics=("parallel",),
            vmem_limit_bytes=_vmem_limit_bytes(vmem_need),
        ),
    )(x2d, w_c, b2d)


# ------------------- fused PreNorm(Linear), K-tiled path (big W) --------------- #
def _prenorm_linear_ktiled_kernel(x_ref, w_ref, b_ref, o_ref, y_ref, acc_ref,
                                  *, block_k, compute_dtype):
    k = pl.program_id(1)
    br = x_ref.shape[0]
    n_k = x_ref.shape[1] // block_k

    @pl.when(k == 0)
    def _():
        x = x_ref[...].astype(jnp.float32)
        mean = jnp.mean(x, axis=-1, keepdims=True)
        centered = x - mean
        var = jnp.mean(centered * centered, axis=-1, keepdims=True)
        y = (centered * jax.lax.rsqrt(var + EPS)).astype(compute_dtype)
        # Stash normalized rows K-chunk-by-K-chunk along the sublane axis so each
        # k step reads a contiguous (br, block_k) slab with a cheap sublane-dim
        # dynamic slice (never a lane-dim dynamic slice).
        for kk in range(n_k):                                       # static unroll
            y_ref[pl.ds(kk * br, br), :] = y[:, kk * block_k:(kk + 1) * block_k]
        acc_ref[...] = jnp.zeros_like(acc_ref)

    row0 = pl.multiple_of(k * br, br)
    acc_ref[...] += jnp.dot(y_ref[pl.ds(row0, br), :], w_ref[...],
                            preferred_element_type=jnp.float32)

    @pl.when(k == pl.num_programs(1) - 1)
    def _():
        o_ref[...] = (acc_ref[...] + b_ref[...]).astype(o_ref.dtype)


def _pre_norm_linear_ktiled(x2d, w_c, b2d, *, br, block_k, compute_dtype, out_dtype):
    n, d_in = x2d.shape
    d_out = w_c.shape[1]
    n_k = d_in // block_k
    grid = (pl.cdiv(n, br), n_k)

    cdb = jnp.dtype(compute_dtype).itemsize
    vmem_need = (2 * br * d_in * x2d.dtype.itemsize          # x tile
                 + 2 * block_k * d_out * cdb                 # W' K-slab (pipelined)
                 + 2 * br * d_out * jnp.dtype(out_dtype).itemsize
                 + n_k * br * block_k * cdb                  # normalized-rows scratch
                 + br * d_out * 4                            # f32 accumulator
                 + 2 * 8 * d_out * 4)

    kernel = functools.partial(_prenorm_linear_ktiled_kernel,
                               block_k=block_k, compute_dtype=compute_dtype)
    return pl.pallas_call(
        kernel,
        out_shape=jax.ShapeDtypeStruct((n, d_out), out_dtype),
        grid_spec=pltpu.PrefetchScalarGridSpec(
            num_scalar_prefetch=0,
            grid=grid,
            in_specs=[
                pl.BlockSpec((br, d_in), lambda i, k: (i, 0)),        # x (resident over k)
                pl.BlockSpec((block_k, d_out), lambda i, k: (k, 0)),  # W' K-slab
                _const_operand_spec((1, d_out), lambda i, k: (0, 0), 4 * d_out),
            ],
            out_specs=pl.BlockSpec((br, d_out), lambda i, k: (i, 0)),
            scratch_shapes=[
                pltpu.VMEM((n_k * br, block_k), compute_dtype),  # normalized rows
                pltpu.VMEM((br, d_out), jnp.float32),            # f32 accumulator
            ],
        ),
        compiler_params=pltpu.CompilerParams(
            dimension_semantics=("parallel", "arbitrary"),
            vmem_limit_bytes=_vmem_limit_bytes(vmem_need),
        ),
    )(x2d, w_c, b2d)


def pre_norm_linear(x, gamma, beta, w, b, *, block_rows=512, block_k=None,
                    compute_dtype=jnp.bfloat16,
                    resident_w_bytes_limit=12 * 2**20):
    """Fused PreNorm with fn = Linear:  Linear(LayerNorm(x)), one pallas_call.

    x: (B, S, D_in).  gamma/beta: (D_in,) or (1, D_in).
    w: (D_in, D_out)  (PyTorch nn.Linear weight transposed).  b: (D_out,).
    compute_dtype: MXU operand dtype (bf16 = peak rate on v5e/v6e/v7x); LN
    statistics and the accumulator are always f32.
    """
    bsz, seq, d_in = x.shape
    d_out = w.shape[-1]
    n = bsz * seq
    x2d = x.reshape(n, d_in)

    # Fold the LayerNorm affine into the Linear (host-side, one-time, f32):
    #   (y * gamma + beta) @ W + b == y @ (gamma[:, None] * W) + (beta @ W + b)
    gamma_v = gamma.reshape(-1).astype(jnp.float32)
    beta_v = beta.reshape(-1).astype(jnp.float32)
    w_f32 = w.astype(jnp.float32)
    w_fold = gamma_v[:, None] * w_f32
    b_fold = beta_v @ w_f32 + b.reshape(-1).astype(jnp.float32)

    # Lane-dense output: pad D_out to a multiple of 128 (unmasked stores).
    d_out_p = _round_up(d_out, 128)
    if d_out_p != d_out:
        w_fold = jnp.pad(w_fold, ((0, 0), (0, d_out_p - d_out)))
        b_fold = jnp.pad(b_fold, (0, d_out_p - d_out))

    # Hoisted cast of the weights (no per-step cast in the kernel); bias stays f32.
    w_c = w_fold.astype(compute_dtype)
    b2d = b_fold.reshape(1, d_out_p).astype(jnp.float32)

    br = _pick_block_rows(n, block_rows)
    w_nbytes = d_in * d_out_p * jnp.dtype(compute_dtype).itemsize

    use_ktiled = (block_k is not None) or (w_nbytes > resident_w_bytes_limit)
    bk = block_k if block_k is not None else _pick_block_k(d_in)
    if use_ktiled and (bk is None or d_in % bk != 0 or bk % 128 != 0):
        use_ktiled = False  # no usable K tiling -> fall back to resident W'

    if use_ktiled:
        out2d = _pre_norm_linear_ktiled(x2d, w_c, b2d, br=br, block_k=bk,
                                        compute_dtype=compute_dtype,
                                        out_dtype=x.dtype)
    else:
        out2d = _pre_norm_linear_resident(x2d, w_c, b2d, br=br,
                                          compute_dtype=compute_dtype,
                                          out_dtype=x.dtype)
    if d_out_p != d_out:
        out2d = out2d[:, :d_out]
    return out2d.reshape(bsz, seq, d_out)


# -------------------- standalone LayerNorm kernel (generic fn) ------------------ #
def _layernorm_kernel(x_ref, gamma_ref, beta_ref, o_ref, *, fuse_fn):
    x = x_ref[...].astype(jnp.float32)
    mean = jnp.mean(x, axis=-1, keepdims=True)
    centered = x - mean
    var = jnp.mean(centered * centered, axis=-1, keepdims=True)
    y = centered * jax.lax.rsqrt(var + EPS)
    y = y * gamma_ref[...].astype(jnp.float32) + beta_ref[...].astype(jnp.float32)
    if fuse_fn is not None:       # elementwise fn fused in-kernel (no HBM round-trip)
        y = fuse_fn(y)
    o_ref[...] = y.astype(o_ref.dtype)


def layernorm(x2d, gamma, beta, *, block_rows=512, fuse_fn=None):
    """x2d: (N, D); gamma/beta: (D,) or (1, D). fuse_fn: optional elementwise fn."""
    n, d = x2d.shape
    g2d = gamma.reshape(1, d)
    b2d = beta.reshape(1, d)
    br = _pick_block_rows(n, block_rows)
    vmem_need = 4 * br * d * x2d.dtype.itemsize + 4 * 8 * d * 4
    kernel = functools.partial(_layernorm_kernel, fuse_fn=fuse_fn)
    return pl.pallas_call(
        kernel,
        out_shape=jax.ShapeDtypeStruct((n, d), x2d.dtype),
        grid_spec=pltpu.PrefetchScalarGridSpec(
            num_scalar_prefetch=0,
            grid=(pl.cdiv(n, br),),
            in_specs=[
                pl.BlockSpec((br, d), lambda i: (i, 0)),
                pl.BlockSpec((1, d), lambda i: (0, 0)),
                pl.BlockSpec((1, d), lambda i: (0, 0)),
            ],
            out_specs=pl.BlockSpec((br, d), lambda i: (i, 0)),
        ),
        compiler_params=pltpu.CompilerParams(
            dimension_semantics=("parallel",),
            vmem_limit_bytes=_vmem_limit_bytes(vmem_need),
        ),
    )(x2d, g2d, b2d)


# ------------------------------ fn: Linear kernel ------------------------------- #
def _linear_kernel(x_ref, w_ref, b_ref, o_ref):
    acc = jnp.dot(x_ref[...], w_ref[...], preferred_element_type=jnp.float32)
    o_ref[...] = (acc + b_ref[...].astype(jnp.float32)).astype(o_ref.dtype)


def linear(x2d, w, b, *, block_rows=512):
    """x2d: (N, D_in); w: (D_in, D_out); b: (D_out,) or (1, D_out)."""
    n, d_in = x2d.shape
    d_out = w.shape[-1]
    b2d = b.reshape(1, d_out)
    br = _pick_block_rows(n, block_rows)
    w_nbytes = d_in * d_out * jnp.dtype(w.dtype).itemsize
    vmem_need = (2 * br * d_in * x2d.dtype.itemsize + 2 * br * d_out * x2d.dtype.itemsize
                 + 2 * w_nbytes + 2 * 8 * d_out * 4)
    return pl.pallas_call(
        _linear_kernel,
        out_shape=jax.ShapeDtypeStruct((n, d_out), x2d.dtype),
        grid_spec=pltpu.PrefetchScalarGridSpec(
            num_scalar_prefetch=0,
            grid=(pl.cdiv(n, br),),
            in_specs=[
                pl.BlockSpec((br, d_in), lambda i: (i, 0)),
                _const_operand_spec((d_in, d_out), lambda i: (0, 0), w_nbytes),
                _const_operand_spec((1, d_out), lambda i: (0, 0), 4 * d_out),
            ],
            out_specs=pl.BlockSpec((br, d_out), lambda i: (i, 0)),
        ),
        compiler_params=pltpu.CompilerParams(
            dimension_semantics=("parallel",),
            vmem_limit_bytes=_vmem_limit_bytes(vmem_need),
        ),
    )(x2d, w, b2d)


# ------------------------------ generic PreNorm -------------------------------- #
def pre_norm(x, gamma, beta, fn, *, fn_is_elementwise=False, block_rows=512):
    """Generic PreNorm.forward equivalent: fn(LayerNorm(x)) for arbitrary fn.

    fn_is_elementwise=True fuses fn into the LayerNorm kernel (no HBM round-trip
    of the normalized activation).  For Linear fns use pre_norm_linear (fully
    fused).
    """
    b_, s_, d_ = x.shape
    x2d = x.reshape(b_ * s_, d_)
    if fn_is_elementwise:
        out2d = layernorm(x2d, gamma, beta, block_rows=block_rows, fuse_fn=fn)
    else:
        # TODO(synk): arbitrary non-elementwise fns still round-trip the normalized
        # activation through HBM; Linear fns should be routed to pre_norm_linear.
        out2d = fn(layernorm(x2d, gamma, beta, block_rows=block_rows))
    return out2d.reshape(b_, s_, out2d.shape[-1])


# -------------------------------- reference (JAX) ------------------------------- #
def _ln_ref(x, gamma, beta):
    mean = jnp.mean(x, axis=-1, keepdims=True)
    var = jnp.mean((x - mean) ** 2, axis=-1, keepdims=True)
    return (x - mean) * jax.lax.rsqrt(var + EPS) * gamma + beta


def _reference(x, gamma, beta, w, b):
    return jnp.einsum("bsd,de->bse", _ln_ref(x, gamma, beta), w) + b


if __name__ == "__main__":
    key = jax.random.PRNGKey(0)
    k1, k2, k3, k4, k5, k6, k7 = jax.random.split(key, 7)

    # ---- fused PreNorm + Linear, D_in = D_out = 128 (resident-W path) ----
    B, S, D = 2, 8, 128
    x = jax.random.normal(k1, (B, S, D), dtype=jnp.float32)
    gamma = jnp.ones((D,), jnp.float32)   # nn.LayerNorm(dim) init: weight=1, bias=0
    beta = jnp.zeros((D,), jnp.float32)
    w = jax.random.normal(k2, (D, D), jnp.float32) * 0.02
    b = jax.random.normal(k3, (D,), jnp.float32) * 0.02
    ref = _reference(x, gamma, beta, w, b)

    # Default bf16 MXU operands (peak-rate path) — looser tolerance vs f32 reference.
    out_bf16 = jax.block_until_ready(pre_norm_linear(x, gamma, beta, w, b))
    assert out_bf16.shape == (B, S, D)
    assert jnp.allclose(out_bf16, ref, atol=2e-2, rtol=2e-2), "fused bf16 mismatch"

    # f32 MXU operands — tight tolerance.
    out_f32 = jax.block_until_ready(
        pre_norm_linear(x, gamma, beta, w, b, compute_dtype=jnp.float32))
    assert jnp.allclose(out_f32, ref, atol=1e-4, rtol=1e-4), "fused f32 mismatch"

    # ---- K-tiled path + non-128-multiple D_out (lane-padding guard) ----
    D2_in, D2_out = 256, 200
    x2 = jax.random.normal(k4, (B, S, D2_in), jnp.float32)
    gamma2 = 1.0 + 0.1 * jax.random.normal(k5, (D2_in,), jnp.float32)
    beta2 = 0.1 * jax.random.normal(k6, (D2_in,), jnp.float32)
    w2 = jax.random.normal(k7, (D2_in, D2_out), jnp.float32) * 0.02
    b2 = jnp.linspace(-0.01, 0.01, D2_out, dtype=jnp.float32)
    ref2 = _reference(x2, gamma2, beta2, w2, b2)
    out2 = jax.block_until_ready(
        pre_norm_linear(x2, gamma2, beta2, w2, b2, block_k=128,
                        compute_dtype=jnp.float32))
    assert out2.shape == (B, S, D2_out)
    assert jnp.allclose(out2, ref2, atol=1e-4, rtol=1e-4), "K-tiled mismatch"

    # ---- generic PreNorm(fn): separate LayerNorm + Linear kernels ----
    out_g = jax.block_until_ready(
        pre_norm(x, gamma, beta, functools.partial(linear, w=w, b=b)))
    assert jnp.allclose(out_g, ref, atol=1e-4, rtol=1e-4), "generic mismatch"

    # ---- generic PreNorm(fn): elementwise fn fused inside the LN kernel ----
    out_e = jax.block_until_ready(
        pre_norm(x, gamma, beta, jax.nn.gelu, fn_is_elementwise=True))
    ref_e = jax.nn.gelu(_ln_ref(x, gamma, beta))
    assert jnp.allclose(out_e, ref_e, atol=1e-4, rtol=1e-4), "elementwise fuse mismatch"

    print("KERNEL_OK")
</pallas_src>

<mosaic_0001>
module attributes {stable_mosaic.version = 11 : i64} {
  func.func @_prenorm_linear_kernel(%arg0: i32, %arg1: memref<8x128xf32, #tpu.memory_space<vmem>>, %arg2: memref<128x128xbf16, #tpu.memory_space<vmem>>, %arg3: memref<1x128xf32, #tpu.memory_space<vmem>>, %arg4: memref<8x128xf32, #tpu.memory_space<vmem>>) attributes {dimension_semantics = [#tpu.dimension_semantics<parallel>], iteration_bounds = array<i64: 2>, scalar_prefetch = 0 : i64, scratch_operands = 0 : i64, tpu.core_type = #tpu.core_type<tc>, window_params = [{transform_indices = @transform_0, window_bounds = array<i64: 8, 128>}, {pipeline_mode = #tpu.pipeline_mode<synchronous>, transform_indices = @transform_1, window_bounds = array<i64: 128, 128>}, {pipeline_mode = #tpu.pipeline_mode<synchronous>, transform_indices = @transform_2, window_bounds = array<i64: 1, 128>}, {transform_indices = @transform_3, window_bounds = array<i64: 8, 128>}]} {
    %c0 = arith.constant 0 : index
    %c0_0 = arith.constant 0 : index
    %0 = vector.load %arg1[%c0, %c0_0] : memref<8x128xf32, #tpu.memory_space<vmem>>, vector<8x128xf32>
    %cst = arith.constant dense<0.000000e+00> : vector<8xf32>
    %1 = vector.multi_reduction <add>, %0, %cst [1] : vector<8x128xf32> to vector<8xf32>
    %2 = vector.shape_cast %1 : vector<8xf32> to vector<8x1xf32>
    %cst_1 = arith.constant 1.280000e+02 : f32
    %3 = vector.broadcast %cst_1 : f32 to vector<8x1xf32>
    %4 = arith.divf %2, %3 : vector<8x1xf32>
    %5 = vector.broadcast %4 : vector<8x1xf32> to vector<8x128xf32>
    %6 = arith.subf %0, %5 : vector<8x128xf32>
    %7 = arith.mulf %6, %6 : vector<8x128xf32>
    %cst_2 = arith.constant dense<0.000000e+00> : vector<8xf32>
    %8 = vector.multi_reduction <add>, %7, %cst_2 [1] : vector<8x128xf32> to vector<8xf32>
    %9 = vector.shape_cast %8 : vector<8xf32> to vector<8x1xf32>
    %cst_3 = arith.constant 1.280000e+02 : f32
    %10 = vector.broadcast %cst_3 : f32 to vector<8x1xf32>
    %11 = arith.divf %9, %10 : vector<8x1xf32>
    %cst_4 = arith.constant 9.99999974E-6 : f32
    %12 = vector.broadcast %cst_4 : f32 to vector<8x1xf32>
    %13 = arith.addf %11, %12 : vector<8x1xf32>
    %14 = math.rsqrt %13 : vector<8x1xf32>
    %15 = vector.broadcast %14 : vector<8x1xf32> to vector<8x128xf32>
    %16 = arith.mulf %6, %15 : vector<8x128xf32>
    %17 = arith.truncf %16 : vector<8x128xf32> to vector<8x128xbf16>
    %c0_5 = arith.constant 0 : index
    %c0_6 = arith.constant 0 : index
    %18 = vector.load %arg2[%c0_5, %c0_6] : memref<128x128xbf16, #tpu.memory_space<vmem>>, vector<128x128xbf16>
    %cst_7 = arith.constant dense<0.000000e+00> : vector<8x128xf32>
    %19 = tpu.matmul %17, %18, %cst_7 {dimension_numbers = #tpu.dot_dimension_numbers<[1], [0], [0], [1], [0, 0, 1, 1], [], []>} : vector<8x128xbf16>, vector<128x128xbf16>, vector<8x128xf32> -> vector<8x128xf32>
    %c0_8 = arith.constant 0 : index
    %c0_9 = arith.constant 0 : index
    %20 = vector.load %arg3[%c0_8, %c0_9] : memref<1x128xf32, #tpu.memory_space<vmem>>, vector<1x128xf32>
    %21 = vector.broadcast %20 : vector<1x128xf32> to vector<8x128xf32>
    %22 = arith.addf %19, %21 : vector<8x128xf32>
    %c0_10 = arith.constant 0 : index
    %c0_11 = arith.constant 0 : index
    %23 = vector.load %arg4[%c0_10, %c0_11] : memref<8x128xf32, #tpu.memory_space<vmem>>, vector<8x128xf32>
    tpu.vector_store %arg4[%c0_10, %c0_11], %22 {strides = array<i32>} : memref<8x128xf32, #tpu.memory_space<vmem>>, vector<8x128xf32>,
    return
  }
  func.func @transform_0(%arg0: i32) -> (i32, i32) {
    %c0_i32 = arith.constant 0 : i32
    %c0_i32_0 = arith.constant 0 : i32
    return %arg0, %c0_i32 : i32, i32
  }
  func.func @transform_1(%arg0: i32) -> (i32, i32) {
    %c0_i32 = arith.constant 0 : i32
    %c0_i32_0 = arith.constant 0 : i32
    %c0_i32_1 = arith.constant 0 : i32
    return %c0_i32, %c0_i32_0 : i32, i32
  }
  func.func @transform_2(%arg0: i32) -> (i32, i32) {
    %c0_i32 = arith.constant 0 : i32
    %c0_i32_0 = arith.constant 0 : i32
    %c0_i32_1 = arith.constant 0 : i32
    return %c0_i32, %c0_i32_0 : i32, i32
  }
  func.func @transform_3(%arg0: i32) -> (i32, i32) {
    %c0_i32 = arith.constant 0 : i32
    %c0_i32_0 = arith.constant 0 : i32
    return %arg0, %c0_i32 : i32, i32
  }
}

</mosaic_0001>

<llo_original>
// kernel: tpu_custom_call.1
$region0: #{tpu_custom_call.1}
  #allocation0 [shape = 'u32[]', space=smem, size = 0x4, offset = 0x4, fixed_abs, tag = 'smem constant byte address 0x4 - core index']
  #allocation1 [shape = 'u32[72,128]{1,0:T(1,128)}', space=vmem, size = 0x9000, scoped, tag = 'internal scratch']
  %s0 = inlined_call_operand.hbm [shape: f32[16,128], index: 0, kind: input, shape index: {}]
  %s1 = inlined_call_operand.hbm [shape: bf16[128,128], index: 1, kind: input, shape index: {}]
  %s2 = inlined_call_operand.vmem [shape: f32[1,128], index: 2, kind: input, shape index: {}]
  %s3 = inlined_call_operand.hbm [shape: f32[16,128], index: 3, kind: output, shape index: {}]
  %s4 = sld [smem:[#allocation0]]
  $region53: #{tpu_custom_call.1} parent=0
    _
  %s6 = ssub.s32 1, %s4
  %s7 = scalar_select 0, %s6, %s4
  $region1: #{tpu_custom_call.1} parent=0
    #allocation2 [shape = 'u8[8192]{0}', space=vmem, size = 0x2000, scoped, tag = 'input window, operand 0']
    #allocation3 [shape = 's32[2]{0}', space=sflag, size = 0x8, scoped, tag = 'scoped memory for tpu_custom_call.1']
    #allocation4 [shape = 's32[2]{0}', space=sflag, size = 0x8, scoped, tag = 'scoped memory for tpu_custom_call.1']
    #allocation5 [shape = 'u8[32768]{0}', space=vmem, size = 0x8000, scoped, tag = 'input window, operand 1, single buffered']
    #allocation6 [shape = 's32[1]{0}', space=sflag, size = 0x4, scoped, tag = 'scoped memory for tpu_custom_call.1']
    #allocation7 [shape = 'u8[8192]{0}', space=vmem, size = 0x2000, scoped, tag = 'output window, operand 0']
    %8 = vsyncpa [#allocation3], 0
    %s9 = scalar_lea.sflag [#allocation3], 1
    %10 = vsyncpa %s9, 0
    %11 = vsyncpa [#allocation6], 0
    %12 = vsyncpa [#allocation4], 0
    %s13 = scalar_lea.sflag [#allocation4], 1
    %14 = vsyncpa %s13, 0
    loop: start=0, step=1, limit=4
    $region2: #{tpu_custom_call.1} parent=1 // loop_pre_header
      _
    $region3: #{tpu_custom_call.1} parent=1 // loop_header
      %s16 = sphi 0, %s20
      %p17 = scmp.ge.s32.totalorder %s16, 4
      %s26 = sphi 0, %s28
      %s29 = sphi 0, %s26
      %s30 = sphi 0, %s29
      %s46 = sphi 0, %s30
      %s50 = sphi 0, %s50
      %s52 = sphi 0, %s50
      %s53 = sphi 0, %s52
      %s67 = sphi 0, %s53
      %s71 = sphi 0, %s71
      %s73 = sphi 0, %s71
      %s74 = sphi 0, %s73
      %s88 = sphi 0, %s74
      %s94 = sphi 0, %s96
      %s97 = sphi 0, %s94
      %s98 = sphi 0, %s97
      %s114 = sphi 0, %s98
    $region4: #{tpu_custom_call.1} parent=1 // loop_header_branch
      %19 = sbr.rel (%p17) target = $region8
    $region5: #{tpu_custom_call.1} parent=1 // loop_body
      %s21 = ssub.s32 %s16, 1
      %s22 = ssub.s32 %s16, 2
      %s23 = sadd.s32 %s16, 1
      %s24 = ssub.s32 %s16, %s23
      %p25 = scmp.eq.s32.totalorder %s24, 0
      %s27 = sadd.s32 %s26, 1
      %s28 = scalar_select %p25, %s26, %s27
      %p31 = pneg %p25
      %p32 = scmp.eq.s32.totalorder %s16, 1
      %p33 = por %p31, %p32
      %p34 = scmp.ne.s32.totalorder %s26, %s29
      %p35 = scmp.eq.s32.totalorder %s16, 0
      %p36 = por %p34, %p35
      %p37 = scmp.ne.s32.totalorder %s26, %s29
      %p38 = scmp.eq.s32.totalorder %s21, 1
      %p39 = por %p37, %p38
      %p40 = scmp.ne.s32.totalorder %s29, %s30
      %p41 = scmp.eq.s32.totalorder %s21, 0
      %p42 = por %p40, %p41
      %p43 = scmp.ne.s32.totalorder %s29, %s30
      %p44 = scmp.eq.s32.totalorder %s22, 1
      %p45 = por %p43, %p44
      %p47 = scmp.ne.s32.totalorder %s30, %s46
      %p48 = scmp.eq.s32.totalorder %s22, 0
      %p49 = por %p47, %p48
      %s51 = sadd.s32 %s50, 1
      %p54 = scmp.eq.s32.totalorder %s16, 1
      %p55 = scmp.ne.s32.totalorder %s50, %s52
      %p56 = scmp.eq.s32.totalorder %s16, 0
      %p57 = por %p55, %p56
      %p58 = scmp.ne.s32.totalorder %s50, %s52
      %p59 = scmp.eq.s32.totalorder %s21, 1
      %p60 = por %p58, %p59
      %p61 = scmp.ne.s32.totalorder %s52, %s53
      %p62 = scmp.eq.s32.totalorder %s21, 0
      %p63 = por %p61, %p62
      %p64 = scmp.ne.s32.totalorder %s52, %s53
      %p65 = scmp.eq.s32.totalorder %s22, 1
      %p66 = por %p64, %p65
      %p68 = scmp.ne.s32.totalorder %s53, %s67
      %p69 = scmp.eq.s32.totalorder %s22, 0
      %p70 = por %p68, %p69
      %s72 = sadd.s32 %s71, 1
      %p75 = scmp.eq.s32.totalorder %s16, 1
      %p76 = scmp.ne.s32.totalorder %s71, %s73
      %p77 = scmp.eq.s32.totalorder %s16, 0
      %p78 = por %p76, %p77
      %p79 = scmp.ne.s32.totalorder %s71, %s73
      %p80 = scmp.eq.s32.totalorder %s21, 1
      %p81 = por %p79, %p80
      %p82 = scmp.ne.s32.totalorder %s73, %s74
      %p83 = scmp.eq.s32.totalorder %s21, 0
      %p84 = por %p82, %p83
      %p85 = scmp.ne.s32.totalorder %s73, %s74
      %p86 = scmp.eq.s32.totalorder %s22, 1
      %p87 = por %p85, %p86
      %p89 = scmp.ne.s32.totalorder %s74, %s88
      %p90 = scmp.eq.s32.totalorder %s22, 0
      %p91 = por %p89, %p90
      %s92 = ssub.s32 %s16, %s23
      %p93 = scmp.eq.s32.totalorder %s92, 0
      %s95 = sadd.s32 %s94, 1
      %s96 = scalar_select %p93, %s94, %s95
      %p99 = pneg %p93
      %p100 = scmp.eq.s32.totalorder %s16, 1
      %p101 = por %p99, %p100
      %p102 = scmp.ne.s32.totalorder %s94, %s97
      %p103 = scmp.eq.s32.totalorder %s16, 0
      %p104 = por %p102, %p103
      %p105 = scmp.ne.s32.totalorder %s94, %s97
      %p106 = scmp.eq.s32.totalorder %s21, 1
      %p107 = por %p105, %p106
      %p108 = scmp.ne.s32.totalorder %s97, %s98
      %p109 = scmp.eq.s32.totalorder %s21, 0
      %p110 = por %p108, %p109
      %p111 = scmp.ne.s32.totalorder %s97, %s98
      %p112 = scmp.eq.s32.totalorder %s22, 1
      %p113 = por %p111, %p112
      %p115 = scmp.ne.s32.totalorder %s98, %s114
      %p116 = scmp.eq.s32.totalorder %s22, 0
      %p117 = por %p115, %p116
      %p118 = scmp.le.s32.totalorder 1, %s16
      %p119 = scmp.lt.s32.totalorder %s16, 3
      %p120 = pnand %p118, %p119
      %p121 = pneg %p120
      // Predicated region
      $region9: #{tpu_custom_call.1} parent=5 // pred_check
        _
      $region10: #{tpu_custom_call.1} parent=5 // pred_check_branch
        %123 = sbr.rel (%p120) target = $region12
      $region11: #{tpu_custom_call.1} parent=5 // pred_region
        %s124 = ssub.s32 %s16, 1
        // Predicated region
        $region13: #{tpu_custom_call.1} parent=11 // pred_check
          %p125 = pneg %p63
        $region14: #{tpu_custom_call.1} parent=11 // pred_check_branch
          %127 = sbr.rel (%p125) target = $region16
        $region15: #{tpu_custom_call.1} parent=11 // pred_region
          %129 = vsyncadd [#allocation6], 0
          %s130 = sshll.u32 %s1, 4
          %s131 = int_to_ptr.hbm [resolvable:$true] %s130
          %s132 = sshll.u32 [#allocation5], 4
          %s133 = int_to_ptr.vmem [resolvable:$true] %s132
          %138 = dma.hbm_to_vmem [thread:$0]  %s131, 1024, %s133, [#allocation6], 64, 64, 4
        $region16: #{tpu_custom_call.1} parent=11 // pred_fallthru
          _
        // Predicated region
        $region17: #{tpu_custom_call.1} parent=11 // pred_check
          %p139 = pneg %p84
        $region18: #{tpu_custom_call.1} parent=11 // pred_check_branch
          %141 = sbr.rel (%p139) target = $region20
        $region19: #{tpu_custom_call.1} parent=11 // pred_region
          _
        $region20: #{tpu_custom_call.1} parent=11 // pred_fallthru
          _
      $region12: #{tpu_custom_call.1} parent=5 // pred_fallthru
        _
      %p142 = scmp.lt.s32.totalorder %s16, 2
      // Predicated region
      $region21: #{tpu_custom_call.1} parent=5 // pred_check
        %p143 = pneg %p142
      $region22: #{tpu_custom_call.1} parent=5 // pred_check_branch
        %145 = sbr.rel (%p143) target = $region24
      $region23: #{tpu_custom_call.1} parent=5 // pred_region
        // Predicated region
        $region25: #{tpu_custom_call.1} parent=23 // pred_check
          %p146 = pneg %p36
        $region26: #{tpu_custom_call.1} parent=23 // pred_check_branch
          %148 = sbr.rel (%p146) target = $region28
        $region27: #{tpu_custom_call.1} parent=23 // pred_region
          %s149 = sand.u32 %s26, 1
          %s150 = scalar_lea.sflag [#allocation3], %s149
          %s151 = sand.u32 %s26, 1
          %s152 = smul.addr %s151, 8
          %s153 = scalar_lea.vmem [#allocation2], %s152
          %155 = vsyncadd %s150, 0
          %s156 = smul.addr %s16, 8
          %s157 = scalar_lea.hbm %s0, %s156
          %s159 = sshll.u32 %s157, 4
          %s160 = int_to_ptr.hbm [resolvable:$true] %s159
          %s161 = sshll.u32 %s153, 4
          %s162 = int_to_ptr.vmem [resolvable:$true] %s161
          %164 = dma.hbm_to_vmem [thread:$0]  %s160, 128, %s162, %s150
        $region28: #{tpu_custom_call.1} parent=23 // pred_fallthru
          _
      $region24: #{tpu_custom_call.1} parent=5 // pred_fallthru
        _
      %p165 = scmp.le.s32.totalorder 1, %s16
      %p166 = scmp.lt.s32.totalorder %s16, 3
      %p167 = pnand %p165, %p166
      %p168 = pneg %p167
      // Predicated region
      $region29: #{tpu_custom_call.1} parent=5 // pred_check
        _
      $region30: #{tpu_custom_call.1} parent=5 // pred_check_branch
        %170 = sbr.rel (%p167) target = $region32
      $region31: #{tpu_custom_call.1} parent=5 // pred_region
        %s171 = ssub.s32 %s16, 1
        %s172 = sand.u32 %s29, 1
        %s173 = scalar_lea.sflag [#allocation3], %s172
        %s174 = sand.u32 %s29, 1
        %s175 = smul.addr %s174, 8
        %s176 = scalar_lea.vmem [#allocation2], %s175
        // Predicated region
        $region33: #{tpu_custom_call.1} parent=31 // pred_check
          %p177 = pneg %p42
        $region34: #{tpu_custom_call.1} parent=31 // pred_check_branch
          %179 = sbr.rel (%p177) target = $region36
        $region35: #{tpu_custom_call.1} parent=31 // pred_region
          %181 = dma.done %s173, 128
        $region36: #{tpu_custom_call.1} parent=31 // pred_fallthru
          _
        // Predicated region
        $region37: #{tpu_custom_call.1} parent=31 // pred_check
          %p182 = pneg %p63
        $region38: #{tpu_custom_call.1} parent=31 // pred_check_branch
          %184 = sbr.rel (%p182) target = $region40
        $region39: #{tpu_custom_call.1} parent=31 // pred_region
          %186 = dma.done [#allocation6], 1024
        $region40: #{tpu_custom_call.1} parent=31 // pred_fallthru
          _
        %s187 = sand.u32 %s29, 1
        %s188 = scalar_lea.sflag [#allocation3], %s187
        %s189 = sand.u32 %s29, 1
        %s190 = smul.addr %s189, 8
        %s191 = scalar_lea.vmem [#allocation2], %s190
        %p192 = pneg %p42
        %p193 = pneg %p39
        %p194 = pneg %p63
        %p195 = pneg %p60
        %p196 = pneg %p84
        %p197 = pneg %p81
        %p198 = pneg %p110
        %p199 = pneg %p107
        %s200 = sand.u32 %s97, 1
        %s201 = scalar_lea.sflag [#allocation4], %s200
        %s202 = sand.u32 %s97, 1
        %s203 = smul.addr %s202, 8
        %s204 = scalar_lea.vmem [#allocation7], %s203
        %v205 = vld [vmem:[%s176] sm:$0xff]
        %206 = vadd.xlane.f32.xlu0 %v205
        %v207 = vpop.xlane.xlu0 %206
        %v208 = vrcp.pop 128.0
        %v209 = vmul.f32 128.0, %v208
        %v210 = vsub.f32 1.0, %v209
        %v211 = vmul.f32 %v208, %v210
        %v212 = vadd.f32 %v208, %v211
        %vm213 = vweird.f32 %v208
        %v214 = vsel %vm213, %v208, %v212
        %v215 = vmul.f32 %v207, %v214
        %v216 = vsub.f32 %v205, %v215
        %v217 = vmul.f32 %v216, %v216
        %218 = vadd.xlane.f32.xlu0 %v217
        %v219 = vpop.xlane.xlu0 %218
        %v220 = vmul.f32 %v219, %v214
        %v221 = vadd.f32 %v220, 1e-05
        %v222 = vrsqrt.pop %v221
        %v223 = vmul.f32 %v222, %v221
        %v224 = vmul.f32 %v223, %v222
        %v225 = vmul.f32 0.5, %v224
        %v226 = vsub.f32 1.5, %v225
        %v227 = vmul.f32 %v222, %v226
        %vm228 = vweird.f32 %v221
        %vm229 = vweird.f32 %v222
        %vm230 = vmor %vm228, %vm229
        %v231 = vsel %vm230, %v222, %v227
        %v232 = vmul.f32 %v216, %v231
        %v233 = vpack.c.bf16 %v232, %v232
        %v234 = vld [vmem:[#allocation5] sm:$0xf]
        %v235 = vld [vmem:[#allocation5 + $0x4] sm:$0xf]
        %v236 = vld [vmem:[#allocation5 + $0x8] sm:$0xf]
        %v237 = vld [vmem:[#allocation5 + $0xc] sm:$0xf]
        %v238 = vld [vmem:[#allocation5 + $0x10] sm:$0xf]
        %v239 = vld [vmem:[#allocation5 + $0x14] sm:$0xf]
        %v240 = vld [vmem:[#allocation5 + $0x18] sm:$0xf]
        %v241 = vld [vmem:[#allocation5 + $0x1c] sm:$0xf]
        %v242 = vld [vmem:[#allocation5 + $0x20] sm:$0xf]
        %v243 = vld [vmem:[#allocation5 + $0x24] sm:$0xf]
        %v244 = vld [vmem:[#allocation5 + $0x28] sm:$0xf]
        %v245 = vld [vmem:[#allocation5 + $0x2c] sm:$0xf]
        %v246 = vld [vmem:[#allocation5 + $0x30] sm:$0xf]
        %v247 = vld [vmem:[#allocation5 + $0x34] sm:$0xf]
        %v248 = vld [vmem:[#allocation5 + $0x38] sm:$0xf]
        %v249 = vld [vmem:[#allocation5 + $0x3c] sm:$0xf]
        %v250 = vld [vmem:[%s2] sm:$0x1]
        %v252 = vperm.slane %v250, 0
        %v270 = vunpack.c.l.b16 %v234
        %v271 = vunpack.c.l.b16 %v235
        %v272 = vunpack.c.l.b16 %v236
        %v273 = vunpack.c.l.b16 %v237
        %v274 = vunpack.c.l.b16 %v238
        %v275 = vunpack.c.l.b16 %v239
        %v276 = vunpack.c.l.b16 %v240
        %v277 = vunpack.c.l.b16 %v241
        %v278 = vunpack.c.l.b16 %v242
        %v279 = vunpack.c.l.b16 %v243
        %v280 = vunpack.c.l.b16 %v244
        %v281 = vunpack.c.l.b16 %v245
        %v282 = vunpack.c.l.b16 %v246
        %v283 = vunpack.c.l.b16 %v247
        %v284 = vunpack.c.l.b16 %v248
        %v285 = vunpack.c.l.b16 %v249
        %v286 = vpack.c.b16 %v271, %v270
        %v287 = vpack.c.b16 %v273, %v272
        %v288 = vpack.c.b16 %v275, %v274
        %v289 = vpack.c.b16 %v277, %v276
        %v290 = vpack.c.b16 %v279, %v278
        %v291 = vpack.c.b16 %v281, %v280
        %v292 = vpack.c.b16 %v283, %v282
        %v293 = vpack.c.b16 %v285, %v284
        %302 = vmatpush.bf16.msra.mxu0 %v293
        %303 = vmatpush.bf16.msra.mxu0 %v292
        %304 = vmatpush.bf16.msra.mxu0 %v291
        %305 = vmatpush.bf16.msra.mxu0 %v290
        %306 = vmatpush.bf16.msra.mxu0 %v289
        %307 = vmatpush.bf16.msra.mxu0 %v288
        %308 = vmatpush.bf16.msra.mxu0 %v287
        %309 = vmatpush.bf16.msra.mxu0 %v286
        %310 = vmatmul.bf16.gmra.mxu0 %v233
        %v311 = vpop.f32.mrf.mxu0
        %v312 = vadd.f32 %v252, %v311
        %v313 = vpop.f32.mrf.mxu0
        %314 = vdwg.mxu0
        %315 = vst [vmem:[%s204] sm:$0xff] %v312
        %s316 = sand.u32 %s97, 1
        %s317 = scalar_lea.sflag [#allocation4], %s316
        %s318 = sand.u32 %s97, 1
        %s319 = smul.addr %s318, 8
        %s320 = scalar_lea.vmem [#allocation7], %s319
        // Predicated region
        $region41: #{tpu_custom_call.1} parent=31 // pred_check
          %p321 = pneg %p107
        $region42: #{tpu_custom_call.1} parent=31 // pred_check_branch
          %323 = sbr.rel (%p321) target = $region44
        $region43: #{tpu_custom_call.1} parent=31 // pred_region
          %325 = vsyncadd %s317, 0
          %s326 = smul.addr %s21, 8
          %s327 = scalar_lea.hbm %s3, %s326
          %s329 = sshll.u32 %s320, 4
          %s330 = int_to_ptr.vmem [resolvable:$true] %s329
          %s331 = sshll.u32 %s327, 4
          %s332 = int_to_ptr.hbm [resolvable:$true] %s331
          %334 = dma.vmem_to_hbm [thread:$0]  %s330, 128, %s332, %s317
        $region44: #{tpu_custom_call.1} parent=31 // pred_fallthru
          _
      $region32: #{tpu_custom_call.1} parent=5 // pred_fallthru
        _
      %p335 = scmp.le.s32.totalorder 2, %s16
      // Predicated region
      $region45: #{tpu_custom_call.1} parent=5 // pred_check
        %p336 = pneg %p335
      $region46: #{tpu_custom_call.1} parent=5 // pred_check_branch
        %338 = sbr.rel (%p336) target = $region48
      $region47: #{tpu_custom_call.1} parent=5 // pred_region
        %s339 = ssub.s32 %s16, 2
        // Predicated region
        $region49: #{tpu_custom_call.1} parent=47 // pred_check
          %p340 = pneg %p113
        $region50: #{tpu_custom_call.1} parent=47 // pred_check_branch
          %342 = sbr.rel (%p340) target = $region52
        $region51: #{tpu_custom_call.1} parent=47 // pred_region
          %s343 = sand.u32 %s98, 1
          %s344 = scalar_lea.sflag [#allocation4], %s343
          %s345 = sand.u32 %s98, 1
          %s346 = smul.addr %s345, 8
          %s347 = scalar_lea.vmem [#allocation7], %s346
          %349 = dma.done %s344, 128
        $region52: #{tpu_custom_call.1} parent=47 // pred_fallthru
          _
      $region48: #{tpu_custom_call.1} parent=5 // pred_fallthru
        _
    $region6: #{tpu_custom_call.1} parent=1 // loop_footer
      %s20 = sadd.s32 1, %s16
    $region7: #{tpu_custom_call.1} parent=1 // loop_footer_branch
      %15 = sbr.rel target = $region3
    $region8: #{tpu_custom_call.1} parent=1 // loop_exit
      _
    %350 = vsyncpa [#allocation3], 1
    %s351 = scalar_lea.sflag [#allocation3], 1
    %352 = vsyncpa %s351, 1
    %353 = vsyncpa [#allocation6], 1
    %354 = vsyncpa [#allocation4], 1
    %s355 = scalar_lea.sflag [#allocation4], 1
    %356 = vsyncpa %s355, 1

</llo_original>
